<compile_context>
chip_gen: v7x
topology: tpu7x:2x2x1
jax: 0.10.0
libtpu: 0.0.40
codegen_flags: <defaults>
</compile_context>

<pallas_src>
import jax
import jax.numpy as jnp
from jax.experimental import pallas as pl
from jax.experimental.pallas import tpu as pltpu


def _tree_sum(parts):
    """Balanced-tree sum of a short Python list of arrays (minimizes dep chain)."""
    while len(parts) > 1:
        nxt = [parts[j] + parts[j + 1] for j in range(0, len(parts) - 1, 2)]
        if len(parts) % 2:
            nxt.append(parts[-1])
        parts = nxt
    return parts[0]


def amodel_loss_kernel(x_ref, w_ref, b_ref, t_ref, loss_ref):
    x = x_ref[...]                       # [B, D] bf16  (VMEM)
    w = w_ref[...]                       # [C, D] bf16  (VMEM, native Linear layout)
    # b_ref: (C,) f32 in SMEM; t_ref: (B,) i32 in SMEM; loss_ref: (1,) f32 SMEM.

    B = x.shape[0]
    C = w.shape[0]

    # ---- Linear: logits = x @ W^T ; contract over D on the MXU, f32 accumulate ----
    logits = jax.lax.dot_general(
        x, w,
        dimension_numbers=(((1,), (1,)), ((), ())),     # contract D with D (rhs transposed)
        preferred_element_type=jnp.float32,
    )                                                   # [B, C] f32

    # Bias: splat the C SMEM scalars onto the logits vreg (balanced select tree).
    cls = jax.lax.broadcasted_iota(jnp.int32, (B, C), 1)
    bias_parts = [jnp.where(cls == c, b_ref[c], jnp.float32(0.0)) for c in range(C)]
    logits = logits + _tree_sum(bias_parts)             # [B, C]

    # ---- Softmax over dim=0 (batch dimension, as in the PyTorch model) ----
    m0 = jnp.max(logits, axis=0, keepdims=True)         # [1, C]
    e0 = jnp.exp(logits - m0)                           # [B, C]
    y = e0 / jnp.sum(e0, axis=0, keepdims=True)         # [B, C], values in (0, 1]

    # ---- Cross entropy over dim=1 (class dim) ----
    # y is a softmax output in (0, 1], so max-subtraction is unnecessary here:
    #   log_softmax(y)[i, c] = y[i, c] - lse_i,  lse_i = log(sum_c exp(y[i, c]))
    lse = jnp.log(jnp.sum(jnp.exp(y), axis=1, keepdims=True))   # [B, 1]

    # picked[i] = y[i, t_i]: build a [B, C] target-column array once from the B
    # SMEM scalars (balanced tree of independent splats), then one compare+select.
    row = jax.lax.broadcasted_iota(jnp.int32, (B, C), 0)
    t_parts = [jnp.where(row == i, t_ref[i], jnp.int32(0)) for i in range(B)]
    t_col = _tree_sum(t_parts)                                   # [B, C], row i == t_i
    picked = jnp.sum(jnp.where(cls == t_col, y, jnp.float32(0.0)),
                     axis=1, keepdims=True)                      # [B, 1]

    per_row = lse - picked                                       # [B, 1] per-sample NLL
    loss_ref[0] = jnp.sum(per_row) * jnp.float32(1.0 / B)        # scalar -> SMEM


def amodel_loss(x, w, b, t):
    """x: [B, D] f32, w: [C, D] f32 (native nn.Linear layout), b: (C,) f32,
    t: (B,) i32 class indices  ->  (1,) f32 loss."""
    # bf16 inputs for the MXU (single-pass on v5e/v6e/v7x) + half the DMA bytes;
    # accumulation and the whole epilogue stay in f32 inside the kernel.
    x_bf = x.astype(jnp.bfloat16)
    w_bf = w.astype(jnp.bfloat16)
    return pl.pallas_call(
        amodel_loss_kernel,
        out_shape=jax.ShapeDtypeStruct((1,), jnp.float32),
        in_specs=[
            pl.BlockSpec(memory_space=pltpu.MemorySpace.VMEM),   # x       [B, D] bf16
            pl.BlockSpec(memory_space=pltpu.MemorySpace.VMEM),   # weight  [C, D] bf16
            pl.BlockSpec(memory_space=pltpu.MemorySpace.SMEM),   # bias    (C,)  f32
            pl.BlockSpec(memory_space=pltpu.MemorySpace.SMEM),   # targets (B,)  i32
        ],
        out_specs=pl.BlockSpec(memory_space=pltpu.MemorySpace.SMEM),
    )(x_bf, w_bf, b, t)


if __name__ == "__main__":
    B, D, C = 8, 1024, 4   # Linear(1024, 4); small batch of 8

    key = jax.random.PRNGKey(0)
    kx, kw, kb, kt = jax.random.split(key, 4)

    # Deterministic synthetic parameters (nn.Linear(1024, 4): weight [4,1024], bias [4]).
    bound = 1.0 / jnp.sqrt(jnp.float32(D))
    weight = jax.random.uniform(kw, (C, D), jnp.float32, -bound, bound)   # [4, 1024]
    bias = jax.random.uniform(kb, (C,), jnp.float32, -bound, bound)       # [4]

    x = jax.random.normal(kx, (B, D), jnp.float32)                        # [8, 1024]
    t = jax.random.randint(kt, (B,), 0, C, jnp.int32)                     # class indices

    loss = amodel_loss(x, weight, bias, t)
    loss = jax.block_until_ready(loss)

    # Pure-JAX f32 reference (mirrors the PyTorch forward exactly).  Tolerance is
    # loosened to cover the bf16 input cast (f32 accumulation) in the kernel.
    logits_ref = x @ weight.T + bias
    y_ref = jax.nn.softmax(logits_ref, axis=0)
    logp_ref = jax.nn.log_softmax(y_ref, axis=1)
    loss_ref = -jnp.mean(logp_ref[jnp.arange(B), t])
    assert jnp.allclose(loss[0], loss_ref, atol=5e-3, rtol=5e-3), (loss, loss_ref)

    print("KERNEL_OK")
</pallas_src>

<mosaic_0001>
module attributes {stable_mosaic.version = 11 : i64} {
  func.func @amodel_loss_kernel(%arg0: memref<8x1024xbf16, #tpu.memory_space<vmem>>, %arg1: memref<4x1024xbf16, #tpu.memory_space<vmem>>, %arg2: memref<4xf32, #tpu.memory_space<smem>>, %arg3: memref<8xi32, #tpu.memory_space<smem>>, %arg4: memref<1xf32, #tpu.memory_space<smem>>) attributes {dimension_semantics = [], scalar_prefetch = 0 : i64, scratch_operands = 0 : i64, tpu.core_type = #tpu.core_type<tc>} {
    %c0 = arith.constant 0 : index
    %c0_0 = arith.constant 0 : index
    %0 = vector.load %arg0[%c0, %c0_0] : memref<8x1024xbf16, #tpu.memory_space<vmem>>, vector<8x1024xbf16>
    %c0_1 = arith.constant 0 : index
    %c0_2 = arith.constant 0 : index
    %1 = vector.load %arg1[%c0_1, %c0_2] : memref<4x1024xbf16, #tpu.memory_space<vmem>>, vector<4x1024xbf16>
    %cst = arith.constant dense<0.000000e+00> : vector<8x4xf32>
    %2 = tpu.matmul %0, %1, %cst {dimension_numbers = #tpu.dot_dimension_numbers<[1], [1], [0], [0], [0, 0, 1, 0], [], []>} : vector<8x1024xbf16>, vector<4x1024xbf16>, vector<8x4xf32> -> vector<8x4xf32>
    %3 = tpu.iota {dimensions = array<i32: 1>} : vector<8x4xi32>
    %c0_i32 = arith.constant 0 : i32
    %4 = vector.broadcast %c0_i32 : i32 to vector<8x4xi32>
    %5 = arith.cmpi eq, %3, %4 : vector<8x4xi32>
    %c0_3 = arith.constant 0 : index
    %6 = memref.load %arg2[%c0_3] : memref<4xf32, #tpu.memory_space<smem>>
    %cst_4 = arith.constant 0.000000e+00 : f32
    %7 = vector.broadcast %6 : f32 to vector<8x4xf32>
    %8 = vector.broadcast %cst_4 : f32 to vector<8x4xf32>
    %9 = arith.select %5, %7, %8 : vector<8x4xi1>, vector<8x4xf32>
    %c1_i32 = arith.constant 1 : i32
    %10 = vector.broadcast %c1_i32 : i32 to vector<8x4xi32>
    %11 = arith.cmpi eq, %3, %10 : vector<8x4xi32>
    %c1 = arith.constant 1 : index
    %12 = memref.load %arg2[%c1] : memref<4xf32, #tpu.memory_space<smem>>
    %cst_5 = arith.constant 0.000000e+00 : f32
    %13 = vector.broadcast %12 : f32 to vector<8x4xf32>
    %14 = vector.broadcast %cst_5 : f32 to vector<8x4xf32>
    %15 = arith.select %11, %13, %14 : vector<8x4xi1>, vector<8x4xf32>
    %c2_i32 = arith.constant 2 : i32
    %16 = vector.broadcast %c2_i32 : i32 to vector<8x4xi32>
    %17 = arith.cmpi eq, %3, %16 : vector<8x4xi32>
    %c2 = arith.constant 2 : index
    %18 = memref.load %arg2[%c2] : memref<4xf32, #tpu.memory_space<smem>>
    %cst_6 = arith.constant 0.000000e+00 : f32
    %19 = vector.broadcast %18 : f32 to vector<8x4xf32>
    %20 = vector.broadcast %cst_6 : f32 to vector<8x4xf32>
    %21 = arith.select %17, %19, %20 : vector<8x4xi1>, vector<8x4xf32>
    %c3_i32 = arith.constant 3 : i32
    %22 = vector.broadcast %c3_i32 : i32 to vector<8x4xi32>
    %23 = arith.cmpi eq, %3, %22 : vector<8x4xi32>
    %c3 = arith.constant 3 : index
    %24 = memref.load %arg2[%c3] : memref<4xf32, #tpu.memory_space<smem>>
    %cst_7 = arith.constant 0.000000e+00 : f32
    %25 = vector.broadcast %24 : f32 to vector<8x4xf32>
    %26 = vector.broadcast %cst_7 : f32 to vector<8x4xf32>
    %27 = arith.select %23, %25, %26 : vector<8x4xi1>, vector<8x4xf32>
    %28 = arith.addf %9, %15 : vector<8x4xf32>
    %29 = arith.addf %21, %27 : vector<8x4xf32>
    %30 = arith.addf %28, %29 : vector<8x4xf32>
    %31 = arith.addf %2, %30 : vector<8x4xf32>
    %cst_8 = arith.constant dense<0xFF800000> : vector<4xf32>
    %32 = vector.multi_reduction <maximumf>, %31, %cst_8 [0] : vector<8x4xf32> to vector<4xf32>
    %33 = vector.shape_cast %32 : vector<4xf32> to vector<1x4xf32>
    %34 = vector.broadcast %33 : vector<1x4xf32> to vector<8x4xf32>
    %35 = arith.subf %31, %34 : vector<8x4xf32>
    %36 = math.exp %35 : vector<8x4xf32>
    %cst_9 = arith.constant dense<0.000000e+00> : vector<4xf32>
    %37 = vector.multi_reduction <add>, %36, %cst_9 [0] : vector<8x4xf32> to vector<4xf32>
    %38 = vector.shape_cast %37 : vector<4xf32> to vector<1x4xf32>
    %39 = vector.broadcast %38 : vector<1x4xf32> to vector<8x4xf32>
    %40 = arith.divf %36, %39 : vector<8x4xf32>
    %41 = math.exp %40 : vector<8x4xf32>
    %cst_10 = arith.constant dense<0.000000e+00> : vector<8xf32>
    %42 = vector.multi_reduction <add>, %41, %cst_10 [1] : vector<8x4xf32> to vector<8xf32>
    %43 = vector.shape_cast %42 : vector<8xf32> to vector<8x1xf32>
    %44 = math.log %43 : vector<8x1xf32>
    %45 = tpu.iota {dimensions = array<i32: 0>} : vector<8x4xi32>
    %c0_i32_11 = arith.constant 0 : i32
    %46 = vector.broadcast %c0_i32_11 : i32 to vector<8x4xi32>
    %47 = arith.cmpi eq, %45, %46 : vector<8x4xi32>
    %c0_12 = arith.constant 0 : index
    %48 = memref.load %arg3[%c0_12] : memref<8xi32, #tpu.memory_space<smem>>
    %c0_i32_13 = arith.constant 0 : i32
    %49 = vector.broadcast %48 : i32 to vector<8x4xi32>
    %50 = vector.broadcast %c0_i32_13 : i32 to vector<8x4xi32>
    %51 = arith.select %47, %49, %50 : vector<8x4xi1>, vector<8x4xi32>
    %c1_i32_14 = arith.constant 1 : i32
    %52 = vector.broadcast %c1_i32_14 : i32 to vector<8x4xi32>
    %53 = arith.cmpi eq, %45, %52 : vector<8x4xi32>
    %c1_15 = arith.constant 1 : index
    %54 = memref.load %arg3[%c1_15] : memref<8xi32, #tpu.memory_space<smem>>
    %c0_i32_16 = arith.constant 0 : i32
    %55 = vector.broadcast %54 : i32 to vector<8x4xi32>
    %56 = vector.broadcast %c0_i32_16 : i32 to vector<8x4xi32>
    %57 = arith.select %53, %55, %56 : vector<8x4xi1>, vector<8x4xi32>
    %c2_i32_17 = arith.constant 2 : i32
    %58 = vector.broadcast %c2_i32_17 : i32 to vector<8x4xi32>
    %59 = arith.cmpi eq, %45, %58 : vector<8x4xi32>
    %c2_18 = arith.constant 2 : index
    %60 = memref.load %arg3[%c2_18] : memref<8xi32, #tpu.memory_space<smem>>
    %c0_i32_19 = arith.constant 0 : i32
    %61 = vector.broadcast %60 : i32 to vector<8x4xi32>
    %62 = vector.broadcast %c0_i32_19 : i32 to vector<8x4xi32>
    %63 = arith.select %59, %61, %62 : vector<8x4xi1>, vector<8x4xi32>
    %c3_i32_20 = arith.constant 3 : i32
    %64 = vector.broadcast %c3_i32_20 : i32 to vector<8x4xi32>
    %65 = arith.cmpi eq, %45, %64 : vector<8x4xi32>
    %c3_21 = arith.constant 3 : index
    %66 = memref.load %arg3[%c3_21] : memref<8xi32, #tpu.memory_space<smem>>
    %c0_i32_22 = arith.constant 0 : i32
    %67 = vector.broadcast %66 : i32 to vector<8x4xi32>
    %68 = vector.broadcast %c0_i32_22 : i32 to vector<8x4xi32>
    %69 = arith.select %65, %67, %68 : vector<8x4xi1>, vector<8x4xi32>
    %c4_i32 = arith.constant 4 : i32
    %70 = vector.broadcast %c4_i32 : i32 to vector<8x4xi32>
    %71 = arith.cmpi eq, %45, %70 : vector<8x4xi32>
    %c4 = arith.constant 4 : index
    %72 = memref.load %arg3[%c4] : memref<8xi32, #tpu.memory_space<smem>>
    %c0_i32_23 = arith.constant 0 : i32
    %73 = vector.broadcast %72 : i32 to vector<8x4xi32>
    %74 = vector.broadcast %c0_i32_23 : i32 to vector<8x4xi32>
    %75 = arith.select %71, %73, %74 : vector<8x4xi1>, vector<8x4xi32>
    %c5_i32 = arith.constant 5 : i32
    %76 = vector.broadcast %c5_i32 : i32 to vector<8x4xi32>
    %77 = arith.cmpi eq, %45, %76 : vector<8x4xi32>
    %c5 = arith.constant 5 : index
    %78 = memref.load %arg3[%c5] : memref<8xi32, #tpu.memory_space<smem>>
    %c0_i32_24 = arith.constant 0 : i32
    %79 = vector.broadcast %78 : i32 to vector<8x4xi32>
    %80 = vector.broadcast %c0_i32_24 : i32 to vector<8x4xi32>
    %81 = arith.select %77, %79, %80 : vector<8x4xi1>, vector<8x4xi32>
    %c6_i32 = arith.constant 6 : i32
    %82 = vector.broadcast %c6_i32 : i32 to vector<8x4xi32>
    %83 = arith.cmpi eq, %45, %82 : vector<8x4xi32>
    %c6 = arith.constant 6 : index
    %84 = memref.load %arg3[%c6] : memref<8xi32, #tpu.memory_space<smem>>
    %c0_i32_25 = arith.constant 0 : i32
    %85 = vector.broadcast %84 : i32 to vector<8x4xi32>
    %86 = vector.broadcast %c0_i32_25 : i32 to vector<8x4xi32>
    %87 = arith.select %83, %85, %86 : vector<8x4xi1>, vector<8x4xi32>
    %c7_i32 = arith.constant 7 : i32
    %88 = vector.broadcast %c7_i32 : i32 to vector<8x4xi32>
    %89 = arith.cmpi eq, %45, %88 : vector<8x4xi32>
    %c7 = arith.constant 7 : index
    %90 = memref.load %arg3[%c7] : memref<8xi32, #tpu.memory_space<smem>>
    %c0_i32_26 = arith.constant 0 : i32
    %91 = vector.broadcast %90 : i32 to vector<8x4xi32>
    %92 = vector.broadcast %c0_i32_26 : i32 to vector<8x4xi32>
    %93 = arith.select %89, %91, %92 : vector<8x4xi1>, vector<8x4xi32>
    %94 = arith.addi %51, %57 : vector<8x4xi32>
    %95 = arith.addi %63, %69 : vector<8x4xi32>
    %96 = arith.addi %75, %81 : vector<8x4xi32>
    %97 = arith.addi %87, %93 : vector<8x4xi32>
    %98 = arith.addi %94, %95 : vector<8x4xi32>
    %99 = arith.addi %96, %97 : vector<8x4xi32>
    %100 = arith.addi %98, %99 : vector<8x4xi32>
    %101 = arith.cmpi eq, %3, %100 : vector<8x4xi32>
    %cst_27 = arith.constant 0.000000e+00 : f32
    %102 = vector.broadcast %cst_27 : f32 to vector<8x4xf32>
    %103 = arith.select %101, %40, %102 : vector<8x4xi1>, vector<8x4xf32>
    %cst_28 = arith.constant dense<0.000000e+00> : vector<8xf32>
    %104 = vector.multi_reduction <add>, %103, %cst_28 [1] : vector<8x4xf32> to vector<8xf32>
    %105 = vector.shape_cast %104 : vector<8xf32> to vector<8x1xf32>
    %106 = arith.subf %44, %105 : vector<8x1xf32>
    %107 = vector.shape_cast %106 : vector<8x1xf32> to vector<1x8x1xf32>
    %cst_29 = arith.constant dense<0.000000e+00> : vector<1xf32>
    %108 = vector.multi_reduction <add>, %107, %cst_29 [1, 2] : vector<1x8x1xf32> to vector<1xf32>
    %109 = vector.shape_cast %108 : vector<1xf32> to vector<1x1x1xf32>
    %110 = vector.extract %109[0, 0, 0] : f32 from vector<1x1x1xf32>
    %cst_30 = arith.constant 1.250000e-01 : f32
    %111 = arith.mulf %110, %cst_30 : f32
    %c0_31 = arith.constant 0 : index
    %112 = memref.load %arg4[%c0_31] : memref<1xf32, #tpu.memory_space<smem>>
    memref.store %111, %arg4[%c0_31] : memref<1xf32, #tpu.memory_space<smem>>
    return
  }
}

</mosaic_0001>

<llo_original>
// kernel: tpu_custom_call.1
$region0: #{tpu_custom_call.1}
  #allocation0 [shape = 'u32[]', space=smem, size = 0x4, offset = 0x4, fixed_abs, tag = 'smem constant byte address 0x4 - core index']
  #allocation1 [shape = 'u32[144,128]{1,0:T(1,128)}', space=vmem, size = 0x12000, scoped, tag = 'internal scratch']
  %s0 = inlined_call_operand.hbm [shape: bf16[8,1024], index: 0, kind: input, shape index: {}]
  %s1 = inlined_call_operand.hbm [shape: bf16[4,1024], index: 1, kind: input, shape index: {}]
  %s2 = inlined_call_operand.vmem [shape: f32[4], index: 2, kind: input, shape index: {}]
  %s3 = inlined_call_operand.vmem [shape: s32[8], index: 3, kind: input, shape index: {}]
  %s4 = inlined_call_operand.hbm [shape: f32[1], index: 4, kind: output, shape index: {}]
  %s5 = sld [smem:[#allocation0]]
  $region42: #{tpu_custom_call.1} parent=0
    _
  %s7 = ssub.s32 1, %s5
  %s8 = scalar_select 0, %s7, %s5
  $region1: #{tpu_custom_call.1} parent=0
    #allocation2 [shape = 'u8[16384]{0}', space=vmem, size = 0x4000, scoped, tag = 'input window, operand 0, single buffered']
    #allocation3 [shape = 's32[1]{0}', space=sflag, size = 0x4, scoped, tag = 'scoped memory for tpu_custom_call.1']
    #allocation4 [shape = 's32[1]{0}', space=sflag, size = 0x4, scoped, tag = 'scoped memory for tpu_custom_call.1']
    #allocation5 [shape = 's32[1]{0}', space=sflag, size = 0x4, scoped, tag = 'scoped memory for tpu_custom_call.1']
    #allocation6 [shape = 'u8[8192]{0}', space=vmem, size = 0x2000, scoped, tag = 'input window, operand 1, single buffered']
    #allocation7 [shape = 's32[1]{0}', space=sflag, size = 0x4, scoped, tag = 'scoped memory for tpu_custom_call.1']
    #allocation8 [shape = 'u8[512]{0}', space=smem, size = 0x200, scoped, tag = 'input window, operand 2, single buffered']
    #allocation9 [shape = 'u8[512]{0}', space=smem, size = 0x200, scoped, tag = 'input window, operand 3, single buffered']
    #allocation10 [shape = 's32[1]{0}', space=sflag, size = 0x4, scoped, tag = 'scoped memory for tpu_custom_call.1']
    #allocation11 [shape = 'u8[512]{0}', space=smem, size = 0x200, scoped, tag = 'output window, operand 0, single buffered']
    %9 = vsyncpa [#allocation3], 0
    %10 = vsyncpa [#allocation7], 0
    %11 = vsyncpa [#allocation5], 0
    %12 = vsyncpa [#allocation10], 0
    %13 = vsyncpa [#allocation4], 0
    // Predicated region
    $region2: #{tpu_custom_call.1} parent=1 // pred_check
      _
    $region3: #{tpu_custom_call.1} parent=1 // pred_check_branch
      %15 = sbr.rel (0) target = $region5
    $region4: #{tpu_custom_call.1} parent=1 // pred_region
      %s17 = ssub.s32 512, 512
      %18 = vsyncadd [#allocation3], %s17
      %s20 = sshll.u32 [#allocation2], 4
      %s21 = int_to_ptr.vmem [resolvable:$true] %s20
      %23 = dma.hbm_to_vmem [thread:$0]  %s0, 512, %s21, [#allocation3]
    $region5: #{tpu_custom_call.1} parent=1 // pred_fallthru
      _
    // Predicated region
    $region6: #{tpu_custom_call.1} parent=1 // pred_check
      _
    $region7: #{tpu_custom_call.1} parent=1 // pred_check_branch
      %25 = sbr.rel (0) target = $region9
    $region8: #{tpu_custom_call.1} parent=1 // pred_region
      %s27 = ssub.s32 256, 256
      %28 = vsyncadd [#allocation7], %s27
      %s30 = sshll.u32 [#allocation6], 4
      %s31 = int_to_ptr.vmem [resolvable:$true] %s30
      %33 = dma.hbm_to_vmem [thread:$0]  %s1, 256, %s31, [#allocation7]
    $region9: #{tpu_custom_call.1} parent=1 // pred_fallthru
      _
    // Predicated region
    $region10: #{tpu_custom_call.1} parent=1 // pred_check
      _
    $region11: #{tpu_custom_call.1} parent=1 // pred_check_branch
      %35 = sbr.rel (0) target = $region13
    $region12: #{tpu_custom_call.1} parent=1 // pred_region
      %s37 = ssub.s32 16, 16
      %38 = vsyncadd [#allocation5], %s37
      %s40 = sshll.u32 %s2, 4
      %s41 = int_to_ptr.vmem [resolvable:$true] %s40
      %43 = dma.vmem_to_smem %s41, 16, [#allocation8], [#allocation5]
    $region13: #{tpu_custom_call.1} parent=1 // pred_fallthru
      _
    // Predicated region
    $region14: #{tpu_custom_call.1} parent=1 // pred_check
      _
    $region15: #{tpu_custom_call.1} parent=1 // pred_check_branch
      %45 = sbr.rel (0) target = $region17
    $region16: #{tpu_custom_call.1} parent=1 // pred_region
      %s47 = ssub.s32 16, 16
      %48 = vsyncadd [#allocation10], %s47
      %s50 = sshll.u32 %s3, 4
      %s51 = int_to_ptr.vmem [resolvable:$true] %s50
      %53 = dma.vmem_to_smem %s51, 16, [#allocation9], [#allocation10]
    $region17: #{tpu_custom_call.1} parent=1 // pred_fallthru
      _
    // Predicated region
    $region18: #{tpu_custom_call.1} parent=1 // pred_check
      _
    $region19: #{tpu_custom_call.1} parent=1 // pred_check_branch
      %55 = sbr.rel (0) target = $region21
    $region20: #{tpu_custom_call.1} parent=1 // pred_region
      %56 = dma.done [#allocation3], 512
    $region21: #{tpu_custom_call.1} parent=1 // pred_fallthru
      _
    // Predicated region
    $region22: #{tpu_custom_call.1} parent=1 // pred_check
      _
    $region23: #{tpu_custom_call.1} parent=1 // pred_check_branch
      %58 = sbr.rel (0) target = $region25
    $region24: #{tpu_custom_call.1} parent=1 // pred_region
      %59 = dma.done [#allocation7], 256
    $region25: #{tpu_custom_call.1} parent=1 // pred_fallthru
      _
    // Predicated region
    $region26: #{tpu_custom_call.1} parent=1 // pred_check
      _
    $region27: #{tpu_custom_call.1} parent=1 // pred_check_branch
      %61 = sbr.rel (0) target = $region29
    $region28: #{tpu_custom_call.1} parent=1 // pred_region
      %62 = dma.done [#allocation5], 16
    $region29: #{tpu_custom_call.1} parent=1 // pred_fallthru
      _
    // Predicated region
    $region30: #{tpu_custom_call.1} parent=1 // pred_check
      _
    $region31: #{tpu_custom_call.1} parent=1 // pred_check_branch
      %64 = sbr.rel (0) target = $region33
    $region32: #{tpu_custom_call.1} parent=1 // pred_region
      %65 = dma.done [#allocation10], 16
    $region33: #{tpu_custom_call.1} parent=1 // pred_fallthru
      _
    %66 = sfence
    %v68 = vld [vmem:[#allocation2] sm:$0xff]
    %v69 = vld [vmem:[#allocation2 + $0x8] sm:$0xff]
    %v70 = vld [vmem:[#allocation2 + $0x10] sm:$0xff]
    %v71 = vld [vmem:[#allocation2 + $0x18] sm:$0xff]
    %v72 = vld [vmem:[#allocation6] sm:$0xff]
    %v73 = vld [vmem:[#allocation6 + $0x8] sm:$0xff]
    %v74 = vlaneseq
    %v75 = vand.u32 %v74, 127
    %vm76 = vcmp.eq.s32.totalorder %v75, 0
    %s77 = sld [smem:[#allocation8]]
    %v78 = vstv %s77
    %v79 = vsel %vm76, %v78, 0.0
    %vm80 = vcmp.eq.s32.totalorder %v75, 1
    %s81 = sld [smem:[#allocation8 + $0x1]]
    %v82 = vstv %s81
    %v83 = vsel %vm80, %v82, 0.0
    %vm84 = vcmp.eq.s32.totalorder %v75, 2
    %s85 = sld [smem:[#allocation8 + $0x2]]
    %v86 = vstv %s85
    %v87 = vsel %vm84, %v86, 0.0
    %vm88 = vcmp.eq.s32.totalorder %v75, 3
    %s89 = sld [smem:[#allocation8 + $0x3]]
    %v90 = vstv %s89
    %v91 = vsel %vm88, %v90, 0.0
    %v92 = vadd.f32 %v79, %v83
    %v93 = vadd.f32 %v87, %v91
    %v94 = vadd.f32 %v92, %v93
    %v99 = vunpack.c.l.b16 %v68
    %v100 = vunpack.c.h.b16 %v68
    %v101 = vunpack.c.l.b16 %v69
    %v102 = vunpack.c.h.b16 %v69
    %v103 = vunpack.c.l.b16 %v70
    %v104 = vunpack.c.h.b16 %v70
    %v105 = vunpack.c.l.b16 %v71
    %v106 = vunpack.c.h.b16 %v71
    %v107 = vpack.c.b16 %v99, %v99
    %v108 = vpack.c.b16 %v100, %v100
    %v109 = vpack.c.b16 %v101, %v101
    %v110 = vpack.c.b16 %v102, %v102
    %v111 = vpack.c.b16 %v103, %v103
    %v112 = vpack.c.b16 %v104, %v104
    %v113 = vpack.c.b16 %v105, %v105
    %v114 = vpack.c.b16 %v106, %v106
    %v125 = vcombine.high %v72, %v72
    %v127 = vunpack.c.l.s4 1983009808
    %v128 = vunpack.c.0.s8 %v127
    %v129 = vlaneseq
    %v130 = vshrl.u32 %v129, 7
    %v131 = vsub.s32 %v128, %v130
    %v132 = vrot.slane %v72, %v131
    %v134 = vunpack.c.l.s4 1983009808
    %v135 = vunpack.c.0.s8 %v134
    %v136 = vlaneseq
    %v137 = vshrl.u32 %v136, 7
    %v138 = vsub.s32 %v135, %v137
    %v139 = vrot.slane %v125, %v138
    %v140 = vcombine.high %v132, %v132
    %v141 = vcombine.high %v139, %v139
    %v142 = vcombine.high %v73, %v73
    %v144 = vunpack.c.l.s4 1983009808
    %v145 = vunpack.c.0.s8 %v144
    %v146 = vlaneseq
    %v147 = vshrl.u32 %v146, 7
    %v148 = vsub.s32 %v145, %v147
    %v149 = vrot.slane %v73, %v148
    %v151 = vunpack.c.l.s4 1983009808
    %v152 = vunpack.c.0.s8 %v151
    %v153 = vlaneseq
    %v154 = vshrl.u32 %v153, 7
    %v155 = vsub.s32 %v152, %v154
    %v156 = vrot.slane %v142, %v155
    %v157 = vcombine.high %v149, %v149
    %v158 = vcombine.high %v156, %v156
    %167 = vmatprep.subr.bf16.mxu0 %v140
    %168 = vmatpush1.bf16.xpose.msra.mxu0 %v132
    %169 = vmatprep.subr.bf16.mxu0 0
    %170 = vmatpush1.bf16.xpose.msra.mxu0 0
    %171 = vmatprep.subr.bf16.mxu0 0
    %172 = vmatpush1.bf16.xpose.msra.mxu0 0
    %173 = vmatprep.subr.bf16.mxu0 0
    %174 = vmatpush1.bf16.xpose.msra.mxu0 0
    %175 = vmatprep.subr.bf16.mxu0 0
    %176 = vmatpush1.bf16.xpose.msra.mxu0 0
    %177 = vmatprep.subr.bf16.mxu0 0
    %178 = vmatpush1.bf16.xpose.msra.mxu0 0
    %179 = vmatprep.subr.bf16.mxu0 0
    %180 = vmatpush1.bf16.xpose.msra.mxu0 0
    %181 = vmatprep.subr.bf16.mxu0 0
    %182 = vmatpush1.bf16.xpose.msra.mxu0 0
    %183 = vmatprep.subr.bf16.mxu0 0
    %184 = vmatpush1.bf16.xpose.msra.mxu0 0
    %185 = vmatprep.subr.bf16.mxu0 0
    %186 = vmatpush1.bf16.xpose.msra.mxu0 0
    %187 = vmatprep.subr.bf16.mxu0 0
    %188 = vmatpush1.bf16.xpose.msra.mxu0 0
    %189 = vmatprep.subr.bf16.mxu0 0
    %190 = vmatpush1.bf16.xpose.msra.mxu0 0
    %191 = vmatprep.subr.bf16.mxu0 0
    %192 = vmatpush1.bf16.xpose.msra.mxu0 0
    %193 = vmatprep.subr.bf16.mxu0 0
    %194 = vmatpush1.bf16.xpose.msra.mxu0 0
    %195 = vmatprep.subr.bf16.mxu0 0
    %196 = vmatpush1.bf16.xpose.msra.mxu0 0
    %197 = vmatprep.subr.bf16.mxu0 0
    %198 = vmatpush1.bf16.xpose.msra.mxu0 0
    %199 = vmatprep.mubr.bf16.mxu0 %v108
    %200 = vmatmul.mubr.bf16.gmra.mrb[0].mxu0 %v107
    %v201 = vpop.f32.mrb[0].mxu0
    %v202 = vadd.f32 %v94, %v201
    %v203 = vpop.f32.mrb[0].mxu0
    %v204 = vpop.f32.mrb[0].mxu0
    %v205 = vpop.f32.mrb[0].mxu0
    %206 = vdwg.mxu0
    %207 = vmatprep.subr.bf16.mxu0 %v141
    %208 = vmatpush1.bf16.xpose.msra.mxu0 %v139
    %209 = vmatprep.subr.bf16.mxu0 0
    %210 = vmatpush1.bf16.xpose.msra.mxu0 0
    %211 = vmatprep.subr.bf16.mxu0 0
    %212 = vmatpush1.bf16.xpose.msra.mxu0 0
    %213 = vmatprep.subr.bf16.mxu0 0
    %214 = vmatpush1.bf16.xpose.msra.mxu0 0
    %215 = vmatprep.subr.bf16.mxu0 0
    %216 = vmatpush1.bf16.xpose.msra.mxu0 0
    %217 = vmatprep.subr.bf16.mxu0 0
    %218 = vmatpush1.bf16.xpose.msra.mxu0 0
    %219 = vmatprep.subr.bf16.mxu0 0
    %220 = vmatpush1.bf16.xpose.msra.mxu0 0
    %221 = vmatprep.subr.bf16.mxu0 0
    %222 = vmatpush1.bf16.xpose.msra.mxu0 0
    %223 = vmatprep.subr.bf16.mxu0 0
    %224 = vmatpush1.bf16.xpose.msra.mxu0 0
    %225 = vmatprep.subr.bf16.mxu0 0
    %226 = vmatpush1.bf16.xpose.msra.mxu0 0
    %227 = vmatprep.subr.bf16.mxu0 0
    %228 = vmatpush1.bf16.xpose.msra.mxu0 0
    %229 = vmatprep.subr.bf16.mxu0 0
    %230 = vmatpush1.bf16.xpose.msra.mxu0 0
    %231 = vmatprep.subr.bf16.mxu0 0
    %232 = vmatpush1.bf16.xpose.msra.mxu0 0
    %233 = vmatprep.subr.bf16.mxu0 0
    %234 = vmatpush1.bf16.xpose.msra.mxu0 0
    %235 = vmatprep.subr.bf16.mxu0 0
    %236 = vmatpush1.bf16.xpose.msra.mxu0 0
    %237 = vmatprep.subr.bf16.mxu0 0
    %238 = vmatpush1.bf16.xpose.msra.mxu0 0
    %239 = vmatprep.mubr.bf16.mxu0 %v110
    %240 = vmatmul.mubr.bf16.gmra.mrb[0].mxu0 %v109
    %v241 = vpop.f32.mrb[0].mxu0
    %v242 = vadd.f32 %v202, %v241
    %v243 = vpop.f32.mrb[0].mxu0
    %v244 = vpop.f32.mrb[0].mxu0
    %v245 = vpop.f32.mrb[0].mxu0
    %246 = vdwg.mxu0
    %247 = vmatprep.subr.bf16.mxu0 %v157
    %248 = vmatpush1.bf16.xpose.msra.mxu0 %v149
    %249 = vmatprep.subr.bf16.mxu0 0
    %250 = vmatpush1.bf16.xpose.msra.mxu0 0
    %251 = vmatprep.subr.bf16.mxu0 0
    %252 = vmatpush1.bf16.xpose.msra.mxu0 0
    %253 = vmatprep.subr.bf16.mxu0 0
    %254 = vmatpush1.bf16.xpose.msra.mxu0 0
    %255 = vmatprep.subr.bf16.mxu0 0
    %256 = vmatpush1.bf16.xpose.msra.mxu0 0
    %257 = vmatprep.subr.bf16.mxu0 0
    %258 = vmatpush1.bf16.xpose.msra.mxu0 0
    %259 = vmatprep.subr.bf16.mxu0 0
    %260 = vmatpush1.bf16.xpose.msra.mxu0 0
    %261 = vmatprep.subr.bf16.mxu0 0
    %262 = vmatpush1.bf16.xpose.msra.mxu0 0
    %263 = vmatprep.subr.bf16.mxu0 0
    %264 = vmatpush1.bf16.xpose.msra.mxu0 0
    %265 = vmatprep.subr.bf16.mxu0 0
    %266 = vmatpush1.bf16.xpose.msra.mxu0 0
    %267 = vmatprep.subr.bf16.mxu0 0
    %268 = vmatpush1.bf16.xpose.msra.mxu0 0
    %269 = vmatprep.subr.bf16.mxu0 0
    %270 = vmatpush1.bf16.xpose.msra.mxu0 0
    %271 = vmatprep.subr.bf16.mxu0 0
    %272 = vmatpush1.bf16.xpose.msra.mxu0 0
    %273 = vmatprep.subr.bf16.mxu0 0
    %274 = vmatpush1.bf16.xpose.msra.mxu0 0
    %275 = vmatprep.subr.bf16.mxu0 0
    %276 = vmatpush1.bf16.xpose.msra.mxu0 0
    %277 = vmatprep.subr.bf16.mxu0 0
    %278 = vmatpush1.bf16.xpose.msra.mxu0 0
    %279 = vmatprep.mubr.bf16.mxu0 %v112
    %280 = vmatmul.mubr.bf16.gmra.mrb[0].mxu0 %v111
    %v281 = vpop.f32.mrb[0].mxu0
    %v282 = vadd.f32 %v242, %v281
    %v283 = vpop.f32.mrb[0].mxu0
    %v284 = vpop.f32.mrb[0].mxu0
    %v285 = vpop.f32.mrb[0].mxu0
    %286 = vdwg.mxu0
    %287 = vmatprep.subr.bf16.mxu0 %v158
    %288 = vmatpush1.bf16.xpose.msra.mxu0 %v156
    %289 = vmatprep.subr.bf16.mxu0 0
    %290 = vmatpush1.bf16.xpose.msra.mxu0 0
    %291 = vmatprep.subr.bf16.mxu0 0
    %292 = vmatpush1.bf16.xpose.msra.mxu0 0
    %293 = vmatprep.subr.bf16.mxu0 0
    %294 = vmatpush1.bf16.xpose.msra.mxu0 0
    %295 = vmatprep.subr.bf16.mxu0 0
    %296 = vmatpush1.bf16.xpose.msra.mxu0 0
    %297 = vmatprep.subr.bf16.mxu0 0
    %298 = vmatpush1.bf16.xpose.msra.mxu0 0
    %299 = vmatprep.subr.bf16.mxu0 0
    %300 = vmatpush1.bf16.xpose.msra.mxu0 0
    %301 = vmatprep.subr.bf16.mxu0 0
    %302 = vmatpush1.bf16.xpose.msra.mxu0 0
    %303 = vmatprep.subr.bf16.mxu0 0
    %304 = vmatpush1.bf16.xpose.msra.mxu0 0
    %305 = vmatprep.subr.bf16.mxu0 0
    %306 = vmatpush1.bf16.xpose.msra.mxu0 0
    %307 = vmatprep.subr.bf16.mxu0 0
    %308 = vmatpush1.bf16.xpose.msra.mxu0 0
    %309 = vmatprep.subr.bf16.mxu0 0
    %310 = vmatpush1.bf16.xpose.msra.mxu0 0
    %311 = vmatprep.subr.bf16.mxu0 0
    %312 = vmatpush1.bf16.xpose.msra.mxu0 0
    %313 = vmatprep.subr.bf16.mxu0 0
    %314 = vmatpush1.bf16.xpose.msra.mxu0 0
    %315 = vmatprep.subr.bf16.mxu0 0
    %316 = vmatpush1.bf16.xpose.msra.mxu0 0
    %317 = vmatprep.subr.bf16.mxu0 0
    %318 = vmatpush1.bf16.xpose.msra.mxu0 0
    %319 = vmatprep.mubr.bf16.mxu0 %v114
    %320 = vmatmul.mubr.bf16.gmra.mrb[0].mxu0 %v113
    %v321 = vpop.f32.mrb[0].mxu0
    %v322 = vadd.f32 %v282, %v321
    %v323 = vpop.f32.mrb[0].mxu0
    %v324 = vpop.f32.mrb[0].mxu0
    %v325 = vpop.f32.mrb[0].mxu0
    %326 = vdwg.mxu0
    %vm327 = vcmask 31744
    %v328 = vsel %vm327, %v322, -inf
    %v329 = vrot.slane %v328, 4
    %v330 = vmax.f32 %v328, %v329
    %v331 = vrot.slane %v330, 2
    %v332 = vmax.f32 %v330, %v331
    %v333 = vrot.slane %v332, 1
    %v334 = vmax.f32 %v332, %v333
    %v335 = vsub.f32 %v322, %v334
    %v336 = vmul.f32 %v335, 1.442695
    %v337 = vpow.pop %v336
    %v338 = vsel %vm327, %v337, 0.0
    %v339 = vrot.slane %v338, 4
    %v340 = vadd.f32 %v338, %v339
    %v341 = vrot.slane %v340, 2
    %v342 = vadd.f32 %v340, %v341
    %v343 = vrot.slane %v342, 1
    %v344 = vadd.f32 %v342, %v343
    %v345 = vrcp.pop %v344
    %v346 = vmul.f32 %v337, %v345
    %v347 = vmul.f32 %v346, 1.442695
    %v348 = vpow.pop %v347
    %v349 = vsel %vm327, %v348, 0.0
    %350 = vadd.xlane.f32.xlu0 %v349
    %v351 = vpop.xlane.xlu0 %350
    %v352 = vlog2.pop %v351
    %v353 = vmul.f32 %v352, 0.6931472
    %v354 = vlaneseq
    %v355 = vshrl.u32 %v354, 7
    %vm356 = vcmp.eq.s32.totalorder %v355, 0
    %s357 = sld [smem:[#allocation9]]
    %v358 = vstv %s357
    %v359 = vsel %vm356, %v358, 0
    %vm360 = vcmp.eq.s32.totalorder %v355, 1
    %s361 = sld [smem:[#allocation9 + $0x1]]
    %v362 = vstv %s361
    %v363 = vsel %vm360, %v362, 0
    %vm364 = vcmp.eq.s32.totalorder %v355, 2
    %s365 = sld [smem:[#allocation9 + $0x2]]
    %v366 = vstv %s365
    %v367 = vsel %vm364, %v366, 0
    %vm368 = vcmp.eq.s32.totalorder %v355, 3
    %s369 = sld [smem:[#allocation9 + $0x3]]
    %v370 = vstv %s369
    %v371 = vsel %vm368, %v370, 0
    %vm372 = vcmp.eq.s32.totalorder %v355, 4
    %s373 = sld [smem:[#allocation9 + $0x4]]
    %v374 = vstv %s373
    %v375 = vsel %vm372, %v374, 0
    %vm376 = vcmp.eq.s32.totalorder %v355, 5
    %s377 = sld [smem:[#allocation9 + $0x5]]
    %v378 = vstv %s377
    %v379 = vsel %vm376, %v378, 0
    %vm380 = vcmp.eq.s32.totalorder %v355, 6
    %s381 = sld [smem:[#allocation9 + $0x6]]
    %v382 = vstv %s381
    %v383 = vsel %vm380, %v382, 0
    %vm384 = vcmp.eq.s32.totalorder %v355, 7
    %s385 = sld [smem:[#allocation9 + $0x7]]
    %v386 = vstv %s385
    %v387 = vsel %vm384, %v386, 0
    %v388 = vadd.s32 %v359, %v363
    %v389 = vadd.s32 %v367, %v371
    %v390 = vadd.s32 %v375, %v379
    %v391 = vadd.s32 %v383, %v387
    %v392 = vadd.s32 %v388, %v389
    %v393 = vadd.s32 %v390, %v391
    %v394 = vadd.s32 %v392, %v393
    %vm395 = vcmp.eq.s32.totalorder %v75, %v394
    %v396 = vsel %vm395, %v346, 0.0
    %v397 = vsel %vm327, %v396, 0.0
    %398 = vadd.xlane.f32.xlu0 %v397
    %v399 = vpop.xlane.xlu0 %398
    %v400 = vsub.f32 %v353, %v399
    %vm401 = vcmask 7168
    %v402 = vsel %vm401, %v400, 0.0
    %403 = vadd.xlane.f32.xlu0 %v402
    %v404 = vpop.xlane.xlu0 %403
    %v405 = vrot.slane %v404, 4
    %v406 = vadd.f32 %v404, %v405
    %v407 = vrot.slane %v406, 2
    %v408 = vadd.f32 %v406, %v407
    %v409 = vrot.slane %v408, 1
    %v410 = vadd.f32 %v408, %v409
    %s411 = vtos %v410
    %s412 = smul.f32 %s411, 0.125
    %s413 = scalar_lea.smem [#allocation11], 0
    %414 = sst [smem:[%s413]] %s412
    // Predicated region
    $region34: #{tpu_custom_call.1} parent=1 // pred_check
      _
    $region35: #{tpu_custom_call.1} parent=1 // pred_check_branch
      %416 = sbr.rel (0) target = $region37
    $region36: #{tpu_custom_call.1} parent=1 // pred_region
      %s418 = ssub.s32 16, 16
      %419 = vsyncadd [#allocation4], %s418
      %422 = dma.smem_to_hbm [#allocation11], 16, %s4, [#allocation4]
    $region37: #{tpu_custom_call.1} parent=1 // pred_fallthru
      _
    // Predicated region
    $region38: #{tpu_custom_call.1} parent=1 // pred_check
      _
    $region39: #{tpu_custom_call.1} parent=1 // pred_check_branch
      %424 = sbr.rel (0) target = $region41
    $region40: #{tpu_custom_call.1} parent=1 // pred_region
      %425 = dma.done [#allocation4], 16
    $region41: #{tpu_custom_call.1} parent=1 // pred_fallthru
      _
    %426 = sfence
    %427 = vsyncpa [#allocation3], 1
    %428 = vsyncpa [#allocation7], 1
    %429 = vsyncpa [#allocation4], 1
    %430 = vsyncpa [#allocation5], 1
    %431 = vsyncpa [#allocation10], 1

</llo_original>
